<compile_context>
chip_gen: v7x
topology: tpu7x:2x2x1
jax: 0.10.0
libtpu: 0.0.40
codegen_flags: <defaults>
</compile_context>

<pallas_src>
import jax
import jax.numpy as jnp
from jax.experimental import pallas as pl
from jax.experimental.pallas import tpu as pltpu


_OUT_LANES = 128  # lane-dense output slab width


def _round_up(v: int, m: int) -> int:
    return ((v + m - 1) // m) * m


def _make_frob_kernel(*, n_r, r_tile, n_c_real, need_col_mask, need_row_mask):
    """Kernel closed over the static shape/masking parameters."""

    def kernel(x_ref, o_ref, acc_ref):
        r_idx = pl.program_id(1)
        last_r = pl.num_programs(1) - 1

        @pl.when(r_idx == 0)
        def _init():
            acc_ref[...] = jnp.zeros_like(acc_ref)

        def _accumulate(mask_rows):
            x = x_ref[...].astype(jnp.float32)      # (b_tile, r_tile, c_in)
            sq = x * x                               # VPU elementwise
            if mask_rows:
                # Only the last (partial) row block needs the row mask.
                row = (jax.lax.broadcasted_iota(jnp.int32, sq.shape, 1)
                       + r_idx * r_tile)
                sq = jnp.where(row < n_r, sq, 0.0)
            # Running per-column partial sums (sublane reduce only); the
            # cross-lane reduce + sqrt are deferred to the finalize step.
            acc_ref[...] += jnp.sum(sq, axis=1)      # (b_tile, c_in)

        if need_row_mask:
            @pl.when(r_idx == last_r)
            def _acc_last():
                _accumulate(True)

            @pl.when(r_idx != last_r)
            def _acc_body():
                _accumulate(False)
        else:
            _accumulate(False)

        @pl.when(r_idx == last_r)
        def _finalize():
            acc = acc_ref[...]                       # (b_tile, c_in)
            if need_col_mask:
                # Mandatory whenever c_in > n_c_real: the extra lanes hold
                # squared right-half data, zero them before reducing.
                col = jax.lax.broadcasted_iota(jnp.int32, acc.shape, 1)
                acc = jnp.where(col < n_c_real, acc, 0.0)
            total = jnp.sum(acc, axis=-1, keepdims=True)     # (b_tile, 1)
            norms = jnp.sqrt(total)
            # Broadcast across 128 lanes -> unmasked lane-dense store once
            # per batch tile.  The wrapper reads lane 0.
            o_ref[...] = jnp.broadcast_to(norms, o_ref.shape)

    return kernel


def complex_frobenius_norm(x: jax.Array, *, row_tile=None,
                           block_byte_budget: int = 8 * 1024 * 1024) -> jax.Array:
    """x: (B, n_r, n_c) float -> (B,) float32 per-sample complex Frobenius norm."""
    B, n_r, n_c = x.shape
    if n_r % 2 != 0:
        raise ValueError("Complex_Frobenius_Norm requires an even number of rows "
                         "(real/imag halves must match).")
    n_c_real = n_c // 2

    itemsize = x.dtype.itemsize
    pack = max(8, 32 // itemsize)          # sublane packing: 8 f32, 16 bf16, 32 int8

    # ---- column window -----------------------------------------------------
    # Fetch only an aligned superset of the left half when the per-row segment
    # is big enough for efficient strided DMA; otherwise fetch full rows
    # (contiguous) and mask columns in finalize.
    c_aligned = _round_up(n_c_real, 128)
    if n_c_real > 0 and n_c_real * itemsize >= 512 and c_aligned <= n_c:
        c_in = c_aligned                   # multiple of 128, covers cols [0, c_in)
    else:
        c_in = n_c                         # narrow / unaligned: full contiguous rows
    need_col_mask = (c_in != n_c_real)

    # ---- joint (b_tile, r_tile) sizing --------------------------------------
    row_bytes = c_in * itemsize            # bytes of one row of one sample
    sample_bytes = max(1, n_r * row_bytes) # bytes of one full-row sample block

    if row_tile is not None:
        r_tile = max(1, min(int(row_tile), n_r))
        if r_tile < n_r:
            r_tile = max(pack, (r_tile // pack) * pack)
            if r_tile >= n_r:
                r_tile = n_r
    elif sample_bytes <= block_byte_budget:
        r_tile = n_r                       # full rows: no reduction axis work, no row mask
    else:
        # Row-tile the reduction axis; prefer a divisor of n_r (multiple of
        # `pack`) so the row mask disappears.
        rows_fit = max(1, block_byte_budget // max(1, row_bytes))
        rows_fit = max(pack, (rows_fit // pack) * pack)
        rows_fit = min(rows_fit, n_r)
        r_tile = 0
        cand = rows_fit
        for _ in range(128):               # bounded divisor search
            if cand < pack:
                break
            if n_r % cand == 0:
                r_tile = cand
                break
            cand -= pack
        if r_tile == 0:
            r_tile = rows_fit              # no nice divisor: mask the last block

    block_rows_bytes = max(1, r_tile * row_bytes)   # per-sample bytes in one block
    if B <= 8:
        b_tile = B
    else:
        fit = max(1, block_byte_budget // block_rows_bytes)
        b_tile = min(B, fit)
        # Megacore (v7x): keep >= 2 batch tiles so the "parallel" axis shards
        # across both TensorCores (neutral on single-TC v5e/v6e).
        if B >= 16:
            b_tile = min(b_tile, _round_up(pl.cdiv(B, 2), 8))
        if b_tile < B:
            b_tile = max(8, (b_tile // 8) * 8)
    num_b = pl.cdiv(B, b_tile)
    b_pad = num_b * b_tile

    num_r = pl.cdiv(n_r, r_tile)
    need_row_mask = (n_r % r_tile) != 0

    kernel = _make_frob_kernel(
        n_r=n_r, r_tile=r_tile, n_c_real=n_c_real,
        need_col_mask=need_col_mask, need_row_mask=need_row_mask)

    # ---- VMEM budget: 2x double-buffered input + acc + out, capped for v7x --
    block_bytes = b_tile * r_tile * c_in * itemsize
    acc_bytes = b_tile * c_in * 4
    out_bytes = b_tile * _OUT_LANES * 4
    vmem_need = 2 * block_bytes + acc_bytes + 2 * out_bytes + (4 << 20)
    vmem_limit = int(min(40 << 20, max(16 << 20, vmem_need)))

    cost = pl.CostEstimate(
        flops=2 * B * n_r * c_in,
        transcendentals=0,
        bytes_accessed=B * n_r * c_in * itemsize + b_pad * _OUT_LANES * 4)

    out = pl.pallas_call(
        kernel,
        out_shape=jax.ShapeDtypeStruct((b_pad, _OUT_LANES), jnp.float32),
        grid_spec=pltpu.PrefetchScalarGridSpec(
            num_scalar_prefetch=0,
            grid=(num_b, num_r),
            in_specs=[
                # Column block pinned to 0 -> never DMA the unused right half
                # (unless the narrow-row fallback chose full rows).
                pl.BlockSpec((b_tile, r_tile, c_in), lambda b, r: (b, r, 0)),
            ],
            out_specs=pl.BlockSpec((b_tile, _OUT_LANES), lambda b, r: (b, 0)),
            scratch_shapes=[pltpu.VMEM((b_tile, c_in), jnp.float32)],
        ),
        compiler_params=pltpu.CompilerParams(
            dimension_semantics=("parallel", "arbitrary"),
            vmem_limit_bytes=vmem_limit),
        cost_estimate=cost,
    )(x)

    return out[:B, 0]


def _reference(x: jax.Array) -> jax.Array:
    B, n_r, n_c = x.shape
    n_r_real, n_c_real = n_r // 2, n_c // 2
    real = x[:, :n_r_real, :n_c_real].astype(jnp.float32)
    imag = x[:, n_r_real:, :n_c_real].astype(jnp.float32)
    return jnp.sqrt(jnp.sum(real * real + imag * imag, axis=(1, 2)))


if __name__ == "__main__":
    key = jax.random.PRNGKey(0)

    # Primary small shape consistent with the module: (batch, n_r, n_c).
    # Narrow columns -> exercises the full-row contiguous-fetch fallback.
    B, n_r, n_c = 2, 8, 16
    x = jax.random.normal(key, (B, n_r, n_c), dtype=jnp.float32)
    out = jax.block_until_ready(complex_frobenius_norm(x))
    ref = _reference(x)
    assert out.shape == (B,)
    assert jnp.allclose(out, ref, rtol=1e-5, atol=1e-5)

    # Row-tiled reduction with a partial last row block (masked only on the
    # last block) and a 128-aligned left-column DMA window (c_in = 128 < 256).
    x2 = jax.random.normal(jax.random.PRNGKey(1), (3, 64, 256), dtype=jnp.float32)
    out2 = jax.block_until_ready(complex_frobenius_norm(x2, row_tile=24))
    assert jnp.allclose(out2, _reference(x2), rtol=1e-5, atol=1e-5)

    # Unaligned left half handled via an aligned superset window + finalize
    # column mask.
    x3 = jax.random.normal(jax.random.PRNGKey(2), (2, 16, 300), dtype=jnp.float32)
    out3 = jax.block_until_ready(complex_frobenius_norm(x3))
    assert jnp.allclose(out3, _reference(x3), rtol=1e-5, atol=1e-5)

    # B >= 16 -> batch axis split into >= 2 "parallel" tiles (megacore path),
    # with a partial last batch tile whose padded rows are sliced off.
    x4 = jax.random.normal(jax.random.PRNGKey(3), (20, 8, 256), dtype=jnp.float32)
    out4 = jax.block_until_ready(complex_frobenius_norm(x4))
    assert jnp.allclose(out4, _reference(x4), rtol=1e-5, atol=1e-5)

    print("KERNEL_OK")
</pallas_src>

<mosaic_0001>
module attributes {stable_mosaic.version = 11 : i64} {
  func.func @kernel(%arg0: i32, %arg1: i32, %arg2: memref<2x8x16xf32, #tpu.memory_space<vmem>>, %arg3: memref<2x128xf32, #tpu.memory_space<vmem>>, %arg4: memref<2x16xf32, #tpu.memory_space<vmem>>) attributes {dimension_semantics = [#tpu.dimension_semantics<parallel>, #tpu.dimension_semantics<arbitrary>], iteration_bounds = array<i64: 1, 1>, scalar_prefetch = 0 : i64, scratch_operands = 1 : i64, tpu.core_type = #tpu.core_type<tc>, window_params = [{transform_indices = @transform_0, window_bounds = array<i64: 2, 8, 16>}, {transform_indices = @transform_1, window_bounds = array<i64: 2, 128>}]} {
    %c0_i32 = arith.constant 0 : i32
    %0 = arith.cmpi eq, %arg1, %c0_i32 : i32
    %1 = arith.extui %0 : i1 to i32
    %c0_i32_0 = arith.constant 0 : i32
    %2 = arith.cmpi ne, %1, %c0_i32_0 : i32
    scf.if %2 {
      %cst_9 = arith.constant 0.000000e+00 : f32
      %12 = vector.broadcast %cst_9 : f32 to vector<2x16xf32>
      %c0_10 = arith.constant 0 : index
      %c0_11 = arith.constant 0 : index
      %13 = vector.load %arg4[%c0_10, %c0_11] : memref<2x16xf32, #tpu.memory_space<vmem>>, vector<2x16xf32>
      tpu.vector_store %arg4[%c0_10, %c0_11], %12 {strides = array<i32>} : memref<2x16xf32, #tpu.memory_space<vmem>>, vector<2x16xf32>,
    } else {
    }
    %c0 = arith.constant 0 : index
    %c0_1 = arith.constant 0 : index
    %c0_2 = arith.constant 0 : index
    %3 = vector.load %arg2[%c0, %c0_1, %c0_2] : memref<2x8x16xf32, #tpu.memory_space<vmem>>, vector<2x8x16xf32>
    %4 = arith.mulf %3, %3 : vector<2x8x16xf32>
    %c0_3 = arith.constant 0 : index
    %c0_4 = arith.constant 0 : index
    %5 = vector.load %arg4[%c0_3, %c0_4] : memref<2x16xf32, #tpu.memory_space<vmem>>, vector<2x16xf32>
    %cst = arith.constant dense<0.000000e+00> : vector<2x16xf32>
    %6 = vector.multi_reduction <add>, %4, %cst [1] : vector<2x8x16xf32> to vector<2x16xf32>
    %7 = arith.addf %5, %6 : vector<2x16xf32>
    %c0_5 = arith.constant 0 : index
    %c0_6 = arith.constant 0 : index
    %8 = vector.load %arg4[%c0_5, %c0_6] : memref<2x16xf32, #tpu.memory_space<vmem>>, vector<2x16xf32>
    tpu.vector_store %arg4[%c0_5, %c0_6], %7 {strides = array<i32>} : memref<2x16xf32, #tpu.memory_space<vmem>>, vector<2x16xf32>,
    %c0_i32_7 = arith.constant 0 : i32
    %9 = arith.cmpi eq, %arg1, %c0_i32_7 : i32
    %10 = arith.extui %9 : i1 to i32
    %c0_i32_8 = arith.constant 0 : i32
    %11 = arith.cmpi ne, %10, %c0_i32_8 : i32
    scf.if %11 {
      %c0_9 = arith.constant 0 : index
      %c0_10 = arith.constant 0 : index
      %12 = vector.load %arg4[%c0_9, %c0_10] : memref<2x16xf32, #tpu.memory_space<vmem>>, vector<2x16xf32>
      %13 = tpu.iota {dimensions = array<i32: 1>} : vector<2x16xi32>
      %c8_i32 = arith.constant 8 : i32
      %14 = vector.broadcast %c8_i32 : i32 to vector<2x16xi32>
      %15 = arith.cmpi slt, %13, %14 : vector<2x16xi32>
      %cst_11 = arith.constant 0.000000e+00 : f32
      %16 = vector.broadcast %cst_11 : f32 to vector<2x16xf32>
      %17 = arith.select %15, %12, %16 : vector<2x16xi1>, vector<2x16xf32>
      %cst_12 = arith.constant dense<0.000000e+00> : vector<2xf32>
      %18 = vector.multi_reduction <add>, %17, %cst_12 [1] : vector<2x16xf32> to vector<2xf32>
      %19 = vector.shape_cast %18 : vector<2xf32> to vector<2x1xf32>
      %20 = math.sqrt %19 : vector<2x1xf32>
      %21 = vector.shape_cast %20 : vector<2x1xf32> to vector<2x1xf32>
      %22 = vector.broadcast %21 : vector<2x1xf32> to vector<2x128xf32>
      %c0_13 = arith.constant 0 : index
      %c0_14 = arith.constant 0 : index
      %23 = vector.load %arg3[%c0_13, %c0_14] : memref<2x128xf32, #tpu.memory_space<vmem>>, vector<2x128xf32>
      tpu.vector_store %arg3[%c0_13, %c0_14], %22 {strides = array<i32>} : memref<2x128xf32, #tpu.memory_space<vmem>>, vector<2x128xf32>,
    } else {
    }
    return
  }
  func.func @transform_0(%arg0: i32, %arg1: i32) -> (i32, i32, i32) {
    %c0_i32 = arith.constant 0 : i32
    %c0_i32_0 = arith.constant 0 : i32
    return %arg0, %arg1, %c0_i32 : i32, i32, i32
  }
  func.func @transform_1(%arg0: i32, %arg1: i32) -> (i32, i32) {
    %c0_i32 = arith.constant 0 : i32
    %c0_i32_0 = arith.constant 0 : i32
    return %arg0, %c0_i32 : i32, i32
  }
}

</mosaic_0001>

<llo_original>
// kernel: tpu_custom_call.1
$region0: #{tpu_custom_call.1}
  #allocation0 [shape = 'u32[]', space=smem, size = 0x4, offset = 0x4, fixed_abs, tag = 'smem constant byte address 0x4 - core index']
  #allocation1 [shape = 'u32[144,128]{1,0:T(1,128)}', space=vmem, size = 0x12000, scoped, tag = 'internal scratch']
  #allocation2 [shape = 'f32[2,16]{1,0:T(2,128)}', space=vmem, size = 0x400, scoped, tag = 'scratch operand']
  %s0 = inlined_call_operand.hbm [shape: f32[2,8,16], index: 0, kind: input, shape index: {}]
  %s1 = inlined_call_operand.hbm [shape: f32[2,128], index: 1, kind: output, shape index: {}]
  %s2 = sld [smem:[#allocation0]]
  $region26: #{tpu_custom_call.1} parent=0
    _
  %s4 = ssub.s32 1, %s2
  %s5 = scalar_select 0, %s4, %s2
  $region1: #{tpu_custom_call.1} parent=0
    #allocation3 [shape = 'u8[8192]{0}', space=vmem, size = 0x2000, scoped, tag = 'input window, operand 0, single buffered']
    #allocation4 [shape = 's32[1]{0}', space=sflag, size = 0x4, scoped, tag = 'scoped memory for tpu_custom_call.1']
    #allocation5 [shape = 's32[1]{0}', space=sflag, size = 0x4, scoped, tag = 'scoped memory for tpu_custom_call.1']
    #allocation6 [shape = 'u8[1024]{0}', space=vmem, size = 0x400, scoped, tag = 'output window, operand 0, single buffered']
    %6 = vsyncpa [#allocation4], 0
    %7 = vsyncpa [#allocation5], 0
    // Predicated region
    $region2: #{tpu_custom_call.1} parent=1 // pred_check
      _
    $region3: #{tpu_custom_call.1} parent=1 // pred_check_branch
      %9 = sbr.rel (0) target = $region5
    $region4: #{tpu_custom_call.1} parent=1 // pred_region
      %s11 = ssub.s32 256, 256
      %12 = vsyncadd [#allocation4], %s11
      %s13 = sshll.u32 [#allocation3], 4
      %s14 = int_to_ptr.vmem [resolvable:$true] %s13
      %19 = dma.hbm_to_vmem [thread:$0]  %s0, 256, %s14, [#allocation4], 128, 128, 8
    $region5: #{tpu_custom_call.1} parent=1 // pred_fallthru
      _
    // Predicated region
    $region6: #{tpu_custom_call.1} parent=1 // pred_check
      _
    $region7: #{tpu_custom_call.1} parent=1 // pred_check_branch
      %21 = sbr.rel (0) target = $region9
    $region8: #{tpu_custom_call.1} parent=1 // pred_region
      %22 = dma.done [#allocation4], 256
    $region9: #{tpu_custom_call.1} parent=1 // pred_fallthru
      _
    %p23 = scmp.eq.s32.totalorder 0, 0
    // Predicated region
    $region10: #{tpu_custom_call.1} parent=1 // pred_check
      %p24 = pneg %p23
    $region11: #{tpu_custom_call.1} parent=1 // pred_check_branch
      %26 = sbr.rel (%p24) target = $region13
    $region12: #{tpu_custom_call.1} parent=1 // pred_region
      %vm27 = vcmask 123904
      %28 = vst.msk [vmem:[#allocation2] sm:$0x3] %vm27, 0.0
    $region13: #{tpu_custom_call.1} parent=1 // pred_fallthru
      _
    %v29 = vld [vmem:[#allocation3] sm:$0xff]
    %v30 = vld [vmem:[#allocation3 + $0x8] sm:$0xff]
    %v31 = vmul.f32 %v29, %v29
    %v32 = vmul.f32 %v30, %v30
    %v33 = vld [vmem:[#allocation2] sm:$0x3]
    %vm34 = vcmask 130048
    %v35 = vsel %vm34, %v31, 0.0
    %v36 = vrot.slane %v35, 4
    %v37 = vadd.f32 %v35, %v36
    %v38 = vrot.slane %v37, 2
    %v39 = vadd.f32 %v37, %v38
    %v40 = vrot.slane %v39, 1
    %v41 = vadd.f32 %v39, %v40
    %v42 = vsel %vm34, %v32, 0.0
    %v43 = vrot.slane %v42, 4
    %v44 = vadd.f32 %v42, %v43
    %v45 = vrot.slane %v44, 2
    %v46 = vadd.f32 %v44, %v45
    %v47 = vrot.slane %v46, 1
    %v48 = vadd.f32 %v46, %v47
    %vm51 = vcmask 1041409
    %v52 = vsel %vm51, %v48, %v41
    %v54 = vadd.f32 %v33, %v52
    %vm55 = vcmask 123904
    %56 = vst.msk [vmem:[#allocation2] sm:$0x3] %vm55, %v54
    // Predicated region
    $region14: #{tpu_custom_call.1} parent=1 // pred_check
      %p57 = pneg %p23
    $region15: #{tpu_custom_call.1} parent=1 // pred_check_branch
      %59 = sbr.rel (%p57) target = $region17
    $region16: #{tpu_custom_call.1} parent=1 // pred_region
      %v60 = vld [vmem:[#allocation2] sm:$0x3]
      %v61 = vlaneseq
      %v62 = vand.u32 %v61, 127
      %vm63 = vcmp.lt.s32.totalorder %v62, 8
      %v64 = vsel %vm63, %v60, 0.0
      %v65 = vsel %vm55, %v64, 0.0
      %66 = vadd.xlane.f32.xlu0 %v65
      %v67 = vpop.xlane.xlu0 %66
      %v68 = vrsqrt.pop %v67
      %v69 = vmul.f32 %v67, %v68
      %vm70 = vcmp.eq.f32.partialorder %v67, inf
      %v71 = vsel %vm70, %v67, %v69
      %vm72 = vcmp.eq.f32.partialorder %v67, 0.0
      %v73 = vand.u32 %v67, 2147483648
      %v74 = vsel %vm72, %v73, %v71
      %75 = vst [vmem:[#allocation6] sm:$0x3] %v74
    $region17: #{tpu_custom_call.1} parent=1 // pred_fallthru
      _
    // Predicated region
    $region18: #{tpu_custom_call.1} parent=1 // pred_check
      _
    $region19: #{tpu_custom_call.1} parent=1 // pred_check_branch
      %77 = sbr.rel (0) target = $region21
    $region20: #{tpu_custom_call.1} parent=1 // pred_region
      %s79 = ssub.s32 32, 32
      %80 = vsyncadd [#allocation5], %s79
      %s82 = sshll.u32 [#allocation6], 4
      %s83 = int_to_ptr.vmem [resolvable:$true] %s82
      %85 = dma.vmem_to_hbm [thread:$0]  %s83, 32, %s1, [#allocation5]
    $region21: #{tpu_custom_call.1} parent=1 // pred_fallthru
      _
    // Predicated region
    $region22: #{tpu_custom_call.1} parent=1 // pred_check
      _
    $region23: #{tpu_custom_call.1} parent=1 // pred_check_branch
      %87 = sbr.rel (0) target = $region25
    $region24: #{tpu_custom_call.1} parent=1 // pred_region
      %88 = dma.done [#allocation5], 32
    $region25: #{tpu_custom_call.1} parent=1 // pred_fallthru
      _
    %89 = vsyncpa [#allocation4], 1
    %90 = vsyncpa [#allocation5], 1

</llo_original>
